<compile_context>
chip_gen: v5e
topology: v5e:2x2
jax: 0.10.0
libtpu: 0.0.40
codegen_flags: <defaults>
</compile_context>

<pallas_src>
import jax
import jax.numpy as jnp
from jax.experimental import pallas as pl
from jax.experimental.pallas import tpu as pltpu

# ----- model config (small synthetic sizes consistent with the module) -----
IMG_C, IMG_H, IMG_W = 3, 32, 32           # img_size  = (3, 32, 32)
LAT_C = 4                                  # latent_size = (4, 4, 4)
PATCH = 8                                  # SD-VAE style 8x spatial downsample
LAT_H, LAT_W = IMG_H // PATCH, IMG_W // PATCH
FEAT = IMG_C * PATCH * PATCH               # 192 pixel features per patch
LAT_PAD = 128                              # lane-dense latent output width
PIX_PAD = 256                              # lane-dense pixel output width (>=FEAT)
MAX_TN = 512                               # row-tile upper bound

# Stand-in deterministic constants for _latent_norm / _inv_latent_norm
# (Normalize(LATENT_DEFAULT_MEAN, LATENT_DEFAULT_STD)).
LATENT_DEFAULT_MEAN = jnp.array([0.5, -0.3, 0.1, 0.0], jnp.float32)
LATENT_DEFAULT_STD = jnp.array([1.5, 0.8, 1.2, 0.9], jnp.float32)


# --------------------------- Pallas kernels ---------------------------------
def _affine_kernel(x_ref, w_ref, b_ref, o_ref):
    # One MXU matmul (bf16 operands, f32 accumulation) + f32 bias.
    o_ref[...] = (
        jnp.dot(x_ref[...], w_ref[...], preferred_element_type=jnp.float32)
        + b_ref[...]
    )


def _affine_clip_kernel(x_ref, w_ref, b_ref, o_ref):
    # Matmul + bias + from_SD clip epilogue (kept in f32; v5e has no bf16 VPU).
    y = jnp.dot(x_ref[...], w_ref[...], preferred_element_type=jnp.float32)
    o_ref[...] = jnp.clip(y + b_ref[...], 0.0, 1.0)


def _row_tiling(n):
    # Large tiles (per-grid-step overhead ~0.35us), but keep >=2 grid steps so
    # both v7x TensorCores get work; sublane dim a multiple of 16 for bf16.
    half = pl.cdiv(n, 2)
    tn = int(min(MAX_TN, max(16, 16 * pl.cdiv(half, 16))))
    n_pad = int(tn * pl.cdiv(n, tn))
    return tn, n_pad


def _rows_affine_call(kernel, rows, w, b):
    """rows (n, f_in) @ w (f_in, f_out) + b, row-tiled over a parallel grid."""
    n, f_in = rows.shape
    f_out = w.shape[1]
    tn, n_pad = _row_tiling(n)
    if n_pad != n:  # pad instead of floor-grid: never drop trailing rows
        rows = jnp.pad(rows, ((0, n_pad - n), (0, 0)))
    rows_bf = rows.astype(jnp.bfloat16)   # halve dominant HBM traffic
    w_bf = w.astype(jnp.bfloat16)
    out = pl.pallas_call(
        kernel,
        out_shape=jax.ShapeDtypeStruct((n_pad, f_out), jnp.float32),
        grid=(n_pad // tn,),
        in_specs=[
            pl.BlockSpec((tn, f_in), lambda i: (i, 0)),
            pl.BlockSpec((f_in, f_out), lambda i: (0, 0)),
            pl.BlockSpec((1, f_out), lambda i: (0, 0)),
        ],
        out_specs=pl.BlockSpec((tn, f_out), lambda i: (i, 0)),
        compiler_params=pltpu.CompilerParams(dimension_semantics=("parallel",)),
    )(rows_bf, w_bf, b)
    return out[:n]


# ------------------------------ glue (plain JAX) -----------------------------
def _img_to_patches(img):
    # (B, C, H, W) NCHW -> (B*nH*nW, C*pH*pW)
    b = img.shape[0]
    x = img.reshape(b, IMG_C, LAT_H, PATCH, LAT_W, PATCH)
    x = x.transpose(0, 2, 4, 1, 3, 5)               # (B, nH, nW, C, pH, pW)
    return x.reshape(b * LAT_H * LAT_W, FEAT)


def _patches_to_img(pix_rows, b):
    x = pix_rows.reshape(b, LAT_H, LAT_W, IMG_C, PATCH, PATCH)
    x = x.transpose(0, 3, 1, 4, 2, 5)
    return x.reshape(b, IMG_C, IMG_H, IMG_W)


def _rows_to_latent(rows, b):
    return rows.reshape(b, LAT_H, LAT_W, LAT_C).transpose(0, 3, 1, 2)  # NCHW


def _latent_to_rows(lat):
    b = lat.shape[0]
    return lat.transpose(0, 2, 3, 1).reshape(b * LAT_H * LAT_W, LAT_C)


def _pad_lanes(a, width):
    return jnp.pad(a, ((0, 0), (0, width - a.shape[1])))


class LatentModelPallas:
    """JAX/Pallas counterpart of LatentModel.forward."""

    def __init__(self, key, has_coder=True, has_decoder=True):
        self.has_coder = has_coder
        self.has_decoder = has_decoder and has_coder
        self.img_size = (IMG_C, IMG_H, IMG_W)
        self.latent_size = (LAT_C, LAT_H, LAT_W) if has_coder else self.img_size
        # TODO(synk): latent_forward is abstract in the base LatentModel; the
        # identity backbone here is what permits the fused-forward folding.
        self._identity_backbone = True

        k0, k1 = jax.random.split(key)
        # Deterministic synthetic coder params (stand-in for AutoencoderKL).
        self.w_enc = 0.02 * jax.random.normal(k0, (FEAT, 2 * LAT_C), jnp.float32)
        self.b_enc = jnp.zeros((1, 2 * LAT_C), jnp.float32)
        self.w_dec = 0.02 * jax.random.normal(k1, (LAT_C, FEAT), jnp.float32)
        self.b_dec = jnp.zeros((1, FEAT), jnp.float32)
        self.mean = LATENT_DEFAULT_MEAN.reshape(1, LAT_C)
        self.std = LATENT_DEFAULT_STD.reshape(1, LAT_C)

        # ---------------- offline weight folding --------------------------
        hp = jax.lax.Precision.HIGHEST
        w_m = self.w_enc[:, :LAT_C]            # latent_dist.mode() keeps mean half
        b_m = self.b_enc[:, :LAT_C]
        col = jnp.sum(w_m, axis=0, keepdims=True)   # ones(1,FEAT) @ w_m

        # encode:  lat = ((2x - 1) @ w_m + b_m - mean) / std
        self.w_enc_f = _pad_lanes(2.0 * w_m / self.std, LAT_PAD)
        self.b_enc_f = _pad_lanes((b_m - col - self.mean) / self.std, LAT_PAD)

        # decode:  pix = clip(0.5 * ((lat*std + mean) @ w_dec + b_dec) + 0.5)
        self.w_dec_f = _pad_lanes(0.5 * self.std.reshape(LAT_C, 1) * self.w_dec, PIX_PAD)
        self.b_dec_f = _pad_lanes(
            0.5 * (jnp.dot(self.mean, self.w_dec, precision=hp) + self.b_dec) + 0.5,
            PIX_PAD)

        # fused forward (latent norm and its inverse cancel exactly):
        #   pix = clip(x @ (w_m @ w_dec) + 0.5*((b_m - col) @ w_dec + b_dec) + 0.5)
        self.w_fwd = _pad_lanes(jnp.dot(w_m, self.w_dec, precision=hp), PIX_PAD)
        self.b_fwd = _pad_lanes(
            0.5 * (jnp.dot(b_m - col, self.w_dec, precision=hp) + self.b_dec) + 0.5,
            PIX_PAD)

    # --- pieces of the base-class forward ---
    def encode(self, img):
        rows = _img_to_patches(img)
        lat_rows = _rows_affine_call(_affine_kernel, rows, self.w_enc_f, self.b_enc_f)
        return _rows_to_latent(lat_rows[:, :LAT_C], img.shape[0])

    def decode(self, latent):
        rows = _latent_to_rows(latent)
        pix = _rows_affine_call(_affine_clip_kernel, rows, self.w_dec_f, self.b_dec_f)
        return _patches_to_img(pix[:, :FEAT], latent.shape[0])

    def latent_forward(self, latent):
        # TODO(synk): abstract in base LatentModel (child supplies the backbone);
        # identity pass-through here.
        return latent

    def forward(self, img):
        if not self.has_coder:
            return self.latent_forward(img)
        if self.has_decoder and self._identity_backbone:
            # Fused encode -> identity -> decode: single lane-dense matmul+clip
            # kernel; the (n, 4) latent never touches HBM.
            rows = _img_to_patches(img)
            pix = _rows_affine_call(_affine_clip_kernel, rows, self.w_fwd, self.b_fwd)
            return _patches_to_img(pix[:, :FEAT], img.shape[0])
        latent = self.encode(img)
        recon = self.latent_forward(latent)
        if self.has_decoder:
            return self.decode(recon)
        return recon


# ------------------------------ reference (pure JAX, unfolded) ---------------
def _reference_forward(model, img):
    hp = jax.lax.Precision.HIGHEST
    rows = _img_to_patches(img)
    s = rows * 2.0 - 1.0                                         # to_SD
    y = jnp.dot(s, model.w_enc, precision=hp) + model.b_enc      # coder.encode
    lat = (y[:, :LAT_C] - model.mean) / model.std                # mode() + _latent_norm
    z = lat * model.std + model.mean                             # _inv_latent_norm
    p = jnp.dot(z, model.w_dec, precision=hp) + model.b_dec      # coder.decode
    pix = jnp.clip((p + 1.0) * 0.5, 0.0, 1.0)                    # from_SD(do_clip=True)
    return _patches_to_img(pix, img.shape[0])


if __name__ == "__main__":
    key = jax.random.PRNGKey(0)
    k_img, k_model = jax.random.split(key)
    img = jax.random.uniform(k_img, (2, IMG_C, IMG_H, IMG_W), jnp.float32)  # NCHW

    model = LatentModelPallas(k_model, has_coder=True, has_decoder=True)

    # fused forward path
    out = jax.block_until_ready(model.forward(img))
    assert out.shape == (2, IMG_C, IMG_H, IMG_W), out.shape

    ref = _reference_forward(model, img)
    assert jnp.allclose(out, ref, atol=5e-2, rtol=5e-2), float(jnp.abs(out - ref).max())

    # standalone encode / decode kernels (used for real backbones or
    # has_decoder=False) must agree with the unfolded reference as well
    lat = model.encode(img)
    assert lat.shape == (2, LAT_C, LAT_H, LAT_W), lat.shape
    out2 = jax.block_until_ready(model.decode(model.latent_forward(lat)))
    assert jnp.allclose(out2, ref, atol=5e-2, rtol=5e-2), float(jnp.abs(out2 - ref).max())

    print("KERNEL_OK")
</pallas_src>

<mosaic_0001>
module attributes {stable_mosaic.version = 11 : i64} {
  func.func @_affine_clip_kernel(%arg0: i32, %arg1: memref<16x192xbf16, #tpu.memory_space<vmem>>, %arg2: memref<192x256xbf16, #tpu.memory_space<vmem>>, %arg3: memref<1x256xf32, #tpu.memory_space<vmem>>, %arg4: memref<16x256xf32, #tpu.memory_space<vmem>>) attributes {dimension_semantics = [#tpu.dimension_semantics<parallel>], iteration_bounds = array<i64: 2>, scalar_prefetch = 0 : i64, scratch_operands = 0 : i64, tpu.core_type = #tpu.core_type<tc>, window_params = [{transform_indices = @transform_0, window_bounds = array<i64: 16, 192>}, {pipeline_mode = #tpu.pipeline_mode<synchronous>, transform_indices = @transform_1, window_bounds = array<i64: 192, 256>}, {pipeline_mode = #tpu.pipeline_mode<synchronous>, transform_indices = @transform_2, window_bounds = array<i64: 1, 256>}, {transform_indices = @transform_3, window_bounds = array<i64: 16, 256>}]} {
    %c0 = arith.constant 0 : index
    %c0_0 = arith.constant 0 : index
    %0 = vector.load %arg1[%c0, %c0_0] : memref<16x192xbf16, #tpu.memory_space<vmem>>, vector<16x192xbf16>
    %c0_1 = arith.constant 0 : index
    %c0_2 = arith.constant 0 : index
    %1 = vector.load %arg2[%c0_1, %c0_2] : memref<192x256xbf16, #tpu.memory_space<vmem>>, vector<192x256xbf16>
    %cst = arith.constant dense<0.000000e+00> : vector<16x256xf32>
    %2 = tpu.matmul %0, %1, %cst {dimension_numbers = #tpu.dot_dimension_numbers<[1], [0], [0], [1], [0, 0, 1, 1], [], []>} : vector<16x192xbf16>, vector<192x256xbf16>, vector<16x256xf32> -> vector<16x256xf32>
    %c0_3 = arith.constant 0 : index
    %c0_4 = arith.constant 0 : index
    %3 = vector.load %arg3[%c0_3, %c0_4] : memref<1x256xf32, #tpu.memory_space<vmem>>, vector<1x256xf32>
    %4 = vector.broadcast %3 : vector<1x256xf32> to vector<16x256xf32>
    %5 = arith.addf %2, %4 : vector<16x256xf32>
    %cst_5 = arith.constant 0.000000e+00 : f32
    %cst_6 = arith.constant 1.000000e+00 : f32
    %6 = vector.broadcast %cst_5 : f32 to vector<16x256xf32>
    %7 = arith.maximumf %6, %5 : vector<16x256xf32>
    %8 = vector.broadcast %cst_6 : f32 to vector<16x256xf32>
    %9 = arith.minimumf %8, %7 : vector<16x256xf32>
    %c0_7 = arith.constant 0 : index
    %c0_8 = arith.constant 0 : index
    %10 = vector.load %arg4[%c0_7, %c0_8] : memref<16x256xf32, #tpu.memory_space<vmem>>, vector<16x256xf32>
    tpu.vector_store %arg4[%c0_7, %c0_8], %9 {strides = array<i32>} : memref<16x256xf32, #tpu.memory_space<vmem>>, vector<16x256xf32>,
    return
  }
  func.func @transform_0(%arg0: i32) -> (i32, i32) {
    %c0_i32 = arith.constant 0 : i32
    %c0_i32_0 = arith.constant 0 : i32
    return %arg0, %c0_i32 : i32, i32
  }
  func.func @transform_1(%arg0: i32) -> (i32, i32) {
    %c0_i32 = arith.constant 0 : i32
    %c0_i32_0 = arith.constant 0 : i32
    %c0_i32_1 = arith.constant 0 : i32
    return %c0_i32, %c0_i32_0 : i32, i32
  }
  func.func @transform_2(%arg0: i32) -> (i32, i32) {
    %c0_i32 = arith.constant 0 : i32
    %c0_i32_0 = arith.constant 0 : i32
    %c0_i32_1 = arith.constant 0 : i32
    return %c0_i32, %c0_i32_0 : i32, i32
  }
  func.func @transform_3(%arg0: i32) -> (i32, i32) {
    %c0_i32 = arith.constant 0 : i32
    %c0_i32_0 = arith.constant 0 : i32
    return %arg0, %c0_i32 : i32, i32
  }
}

</mosaic_0001>

<llo_original>
// kernel: tpu_custom_call.1
$region0: #{tpu_custom_call.1}
  #allocation0 [shape = 'u32[]', space=smem, size = 0x4, offset = 0x4, fixed_abs, tag = 'smem constant byte address 0x4 - core index']
  #allocation1 [shape = 'u32[72,128]{1,0:T(1,128)}', space=vmem, size = 0x9000, scoped, tag = 'internal scratch']
  %s0 = inlined_call_operand.hbm [shape: bf16[32,192], index: 0, kind: input, shape index: {}]
  %s1 = inlined_call_operand.hbm [shape: bf16[192,256], index: 1, kind: input, shape index: {}]
  %s2 = inlined_call_operand.hbm [shape: f32[1,256], index: 2, kind: input, shape index: {}]
  %s3 = inlined_call_operand.hbm [shape: f32[32,256], index: 3, kind: output, shape index: {}]
  %s4 = sld [smem:[#allocation0]]
  $region57: #{tpu_custom_call.1} parent=0
    _
  %s6 = ssub.s32 1, %s4
  %s7 = scalar_select 0, %s6, %s4
  $region1: #{tpu_custom_call.1} parent=0
    #allocation2 [shape = 'u8[16384]{0}', space=vmem, size = 0x4000, scoped, tag = 'input window, operand 0']
    #allocation3 [shape = 's32[2]{0}', space=sflag, size = 0x8, scoped, tag = 'scoped memory for tpu_custom_call.1']
    #allocation4 [shape = 's32[2]{0}', space=sflag, size = 0x8, scoped, tag = 'scoped memory for tpu_custom_call.1']
    #allocation5 [shape = 'u8[98304]{0}', space=vmem, size = 0x18000, scoped, tag = 'input window, operand 1, single buffered']
    #allocation6 [shape = 's32[1]{0}', space=sflag, size = 0x4, scoped, tag = 'scoped memory for tpu_custom_call.1']
    #allocation7 [shape = 'u8[1024]{0}', space=vmem, size = 0x400, scoped, tag = 'input window, operand 2, single buffered']
    #allocation8 [shape = 'u8[32768]{0}', space=vmem, size = 0x8000, scoped, tag = 'output window, operand 0']
    %8 = vsyncpa [#allocation3], 0
    %s9 = scalar_lea.sflag [#allocation3], 1
    %10 = vsyncpa %s9, 0
    %11 = vsyncpa [#allocation6], 0
    %12 = vsyncpa [#allocation4], 0
    %s13 = scalar_lea.sflag [#allocation4], 1
    %14 = vsyncpa %s13, 0
    loop: start=0, step=1, limit=4
    $region2: #{tpu_custom_call.1} parent=1 // loop_pre_header
      _
    $region3: #{tpu_custom_call.1} parent=1 // loop_header
      %s16 = sphi 0, %s20
      %p17 = scmp.ge.s32.totalorder %s16, 4
      %s26 = sphi 0, %s28
      %s29 = sphi 0, %s26
      %s30 = sphi 0, %s29
      %s46 = sphi 0, %s30
      %s50 = sphi 0, %s50
      %s52 = sphi 0, %s50
      %s53 = sphi 0, %s52
      %s67 = sphi 0, %s53
      %s71 = sphi 0, %s71
      %s73 = sphi 0, %s71
      %s74 = sphi 0, %s73
      %s88 = sphi 0, %s74
      %s94 = sphi 0, %s96
      %s97 = sphi 0, %s94
      %s98 = sphi 0, %s97
      %s114 = sphi 0, %s98
    $region4: #{tpu_custom_call.1} parent=1 // loop_header_branch
      %19 = sbr.rel (%p17) target = $region8
    $region5: #{tpu_custom_call.1} parent=1 // loop_body
      %s21 = ssub.s32 %s16, 1
      %s22 = ssub.s32 %s16, 2
      %s23 = sadd.s32 %s16, 1
      %s24 = ssub.s32 %s16, %s23
      %p25 = scmp.eq.s32.totalorder %s24, 0
      %s27 = sadd.s32 %s26, 1
      %s28 = scalar_select %p25, %s26, %s27
      %p31 = pneg %p25
      %p32 = scmp.eq.s32.totalorder %s16, 1
      %p33 = por %p31, %p32
      %p34 = scmp.ne.s32.totalorder %s26, %s29
      %p35 = scmp.eq.s32.totalorder %s16, 0
      %p36 = por %p34, %p35
      %p37 = scmp.ne.s32.totalorder %s26, %s29
      %p38 = scmp.eq.s32.totalorder %s21, 1
      %p39 = por %p37, %p38
      %p40 = scmp.ne.s32.totalorder %s29, %s30
      %p41 = scmp.eq.s32.totalorder %s21, 0
      %p42 = por %p40, %p41
      %p43 = scmp.ne.s32.totalorder %s29, %s30
      %p44 = scmp.eq.s32.totalorder %s22, 1
      %p45 = por %p43, %p44
      %p47 = scmp.ne.s32.totalorder %s30, %s46
      %p48 = scmp.eq.s32.totalorder %s22, 0
      %p49 = por %p47, %p48
      %s51 = sadd.s32 %s50, 1
      %p54 = scmp.eq.s32.totalorder %s16, 1
      %p55 = scmp.ne.s32.totalorder %s50, %s52
      %p56 = scmp.eq.s32.totalorder %s16, 0
      %p57 = por %p55, %p56
      %p58 = scmp.ne.s32.totalorder %s50, %s52
      %p59 = scmp.eq.s32.totalorder %s21, 1
      %p60 = por %p58, %p59
      %p61 = scmp.ne.s32.totalorder %s52, %s53
      %p62 = scmp.eq.s32.totalorder %s21, 0
      %p63 = por %p61, %p62
      %p64 = scmp.ne.s32.totalorder %s52, %s53
      %p65 = scmp.eq.s32.totalorder %s22, 1
      %p66 = por %p64, %p65
      %p68 = scmp.ne.s32.totalorder %s53, %s67
      %p69 = scmp.eq.s32.totalorder %s22, 0
      %p70 = por %p68, %p69
      %s72 = sadd.s32 %s71, 1
      %p75 = scmp.eq.s32.totalorder %s16, 1
      %p76 = scmp.ne.s32.totalorder %s71, %s73
      %p77 = scmp.eq.s32.totalorder %s16, 0
      %p78 = por %p76, %p77
      %p79 = scmp.ne.s32.totalorder %s71, %s73
      %p80 = scmp.eq.s32.totalorder %s21, 1
      %p81 = por %p79, %p80
      %p82 = scmp.ne.s32.totalorder %s73, %s74
      %p83 = scmp.eq.s32.totalorder %s21, 0
      %p84 = por %p82, %p83
      %p85 = scmp.ne.s32.totalorder %s73, %s74
      %p86 = scmp.eq.s32.totalorder %s22, 1
      %p87 = por %p85, %p86
      %p89 = scmp.ne.s32.totalorder %s74, %s88
      %p90 = scmp.eq.s32.totalorder %s22, 0
      %p91 = por %p89, %p90
      %s92 = ssub.s32 %s16, %s23
      %p93 = scmp.eq.s32.totalorder %s92, 0
      %s95 = sadd.s32 %s94, 1
      %s96 = scalar_select %p93, %s94, %s95
      %p99 = pneg %p93
      %p100 = scmp.eq.s32.totalorder %s16, 1
      %p101 = por %p99, %p100
      %p102 = scmp.ne.s32.totalorder %s94, %s97
      %p103 = scmp.eq.s32.totalorder %s16, 0
      %p104 = por %p102, %p103
      %p105 = scmp.ne.s32.totalorder %s94, %s97
      %p106 = scmp.eq.s32.totalorder %s21, 1
      %p107 = por %p105, %p106
      %p108 = scmp.ne.s32.totalorder %s97, %s98
      %p109 = scmp.eq.s32.totalorder %s21, 0
      %p110 = por %p108, %p109
      %p111 = scmp.ne.s32.totalorder %s97, %s98
      %p112 = scmp.eq.s32.totalorder %s22, 1
      %p113 = por %p111, %p112
      %p115 = scmp.ne.s32.totalorder %s98, %s114
      %p116 = scmp.eq.s32.totalorder %s22, 0
      %p117 = por %p115, %p116
      %p118 = scmp.le.s32.totalorder 1, %s16
      %p119 = scmp.lt.s32.totalorder %s16, 3
      %p120 = pnand %p118, %p119
      %p121 = pneg %p120
      // Predicated region
      $region9: #{tpu_custom_call.1} parent=5 // pred_check
        _
      $region10: #{tpu_custom_call.1} parent=5 // pred_check_branch
        %123 = sbr.rel (%p120) target = $region12
      $region11: #{tpu_custom_call.1} parent=5 // pred_region
        %s124 = ssub.s32 %s16, 1
        // Predicated region
        $region13: #{tpu_custom_call.1} parent=11 // pred_check
          %p125 = pneg %p63
        $region14: #{tpu_custom_call.1} parent=11 // pred_check_branch
          %127 = sbr.rel (%p125) target = $region16
        $region15: #{tpu_custom_call.1} parent=11 // pred_region
          %129 = vsyncadd [#allocation6], 0
          %s130 = sshll.u32 %s1, 4
          %s131 = int_to_ptr.hbm [resolvable:$true] %s130
          %s132 = sshll.u32 [#allocation5], 4
          %s133 = int_to_ptr.vmem [resolvable:$true] %s132
          %138 = dma.hbm_to_vmem [thread:$0]  %s131, 3072, %s133, [#allocation6], 128, 128, 8
        $region16: #{tpu_custom_call.1} parent=11 // pred_fallthru
          _
        // Predicated region
        $region17: #{tpu_custom_call.1} parent=11 // pred_check
          %p139 = pneg %p84
        $region18: #{tpu_custom_call.1} parent=11 // pred_check_branch
          %141 = sbr.rel (%p139) target = $region20
        $region19: #{tpu_custom_call.1} parent=11 // pred_region
          %143 = vsyncadd [#allocation6], 0
          %s145 = sshll.u32 %s2, 4
          %s146 = int_to_ptr.hbm [resolvable:$true] %s145
          %s147 = sshll.u32 [#allocation7], 4
          %s148 = int_to_ptr.vmem [resolvable:$true] %s147
          %150 = dma.hbm_to_vmem [thread:$0]  %s146, 32, %s148, [#allocation6]
        $region20: #{tpu_custom_call.1} parent=11 // pred_fallthru
          _
      $region12: #{tpu_custom_call.1} parent=5 // pred_fallthru
        _
      %p151 = scmp.lt.s32.totalorder %s16, 2
      // Predicated region
      $region21: #{tpu_custom_call.1} parent=5 // pred_check
        %p152 = pneg %p151
      $region22: #{tpu_custom_call.1} parent=5 // pred_check_branch
        %154 = sbr.rel (%p152) target = $region24
      $region23: #{tpu_custom_call.1} parent=5 // pred_region
        // Predicated region
        $region25: #{tpu_custom_call.1} parent=23 // pred_check
          %p155 = pneg %p36
        $region26: #{tpu_custom_call.1} parent=23 // pred_check_branch
          %157 = sbr.rel (%p155) target = $region28
        $region27: #{tpu_custom_call.1} parent=23 // pred_region
          %s158 = sand.u32 %s26, 1
          %s159 = scalar_lea.sflag [#allocation3], %s158
          %s160 = sand.u32 %s26, 1
          %s161 = smul.addr %s160, 16
          %s162 = scalar_lea.vmem [#allocation2], %s161
          %s163 = smul.u32 2, %s16
          %165 = vsyncadd %s159, 0
          %s166 = smul.addr %s163, 2
          %s167 = smul.addr %s166, 4
          %s168 = scalar_lea.hbm %s0, %s167
          %s169 = sshll.u32 %s168, 4
          %s170 = int_to_ptr.hbm [resolvable:$true] %s169
          %s171 = sshll.u32 %s162, 4
          %s172 = int_to_ptr.vmem [resolvable:$true] %s171
          %177 = dma.hbm_to_vmem [thread:$0]  %s170, 256, %s172, %s159, 128, 128, 8
        $region28: #{tpu_custom_call.1} parent=23 // pred_fallthru
          _
      $region24: #{tpu_custom_call.1} parent=5 // pred_fallthru
        _
      %p178 = scmp.le.s32.totalorder 1, %s16
      %p179 = scmp.lt.s32.totalorder %s16, 3
      %p180 = pnand %p178, %p179
      %p181 = pneg %p180
      // Predicated region
      $region29: #{tpu_custom_call.1} parent=5 // pred_check
        _
      $region30: #{tpu_custom_call.1} parent=5 // pred_check_branch
        %183 = sbr.rel (%p180) target = $region32
      $region31: #{tpu_custom_call.1} parent=5 // pred_region
        %s184 = ssub.s32 %s16, 1
        %s185 = sand.u32 %s29, 1
        %s186 = scalar_lea.sflag [#allocation3], %s185
        %s187 = sand.u32 %s29, 1
        %s188 = smul.addr %s187, 16
        %s189 = scalar_lea.vmem [#allocation2], %s188
        // Predicated region
        $region33: #{tpu_custom_call.1} parent=31 // pred_check
          %p190 = pneg %p42
        $region34: #{tpu_custom_call.1} parent=31 // pred_check_branch
          %192 = sbr.rel (%p190) target = $region36
        $region35: #{tpu_custom_call.1} parent=31 // pred_region
          %194 = dma.done %s186, 256
        $region36: #{tpu_custom_call.1} parent=31 // pred_fallthru
          _
        // Predicated region
        $region37: #{tpu_custom_call.1} parent=31 // pred_check
          %p195 = pneg %p63
        $region38: #{tpu_custom_call.1} parent=31 // pred_check_branch
          %197 = sbr.rel (%p195) target = $region40
        $region39: #{tpu_custom_call.1} parent=31 // pred_region
          %199 = dma.done [#allocation6], 3072
        $region40: #{tpu_custom_call.1} parent=31 // pred_fallthru
          _
        // Predicated region
        $region41: #{tpu_custom_call.1} parent=31 // pred_check
          %p200 = pneg %p84
        $region42: #{tpu_custom_call.1} parent=31 // pred_check_branch
          %202 = sbr.rel (%p200) target = $region44
        $region43: #{tpu_custom_call.1} parent=31 // pred_region
          %204 = dma.done [#allocation6], 32
        $region44: #{tpu_custom_call.1} parent=31 // pred_fallthru
          _
        %s205 = sand.u32 %s29, 1
        %s206 = scalar_lea.sflag [#allocation3], %s205
        %s207 = sand.u32 %s29, 1
        %s208 = smul.addr %s207, 16
        %s209 = scalar_lea.vmem [#allocation2], %s208
        %p210 = pneg %p42
        %p211 = pneg %p39
        %p212 = pneg %p63
        %p213 = pneg %p60
        %p214 = pneg %p84
        %p215 = pneg %p81
        %p216 = pneg %p110
        %p217 = pneg %p107
        %s218 = sand.u32 %s97, 1
        %s219 = scalar_lea.sflag [#allocation4], %s218
        %s220 = sand.u32 %s97, 1
        %s221 = smul.addr %s220, 32
        %s222 = scalar_lea.vmem [#allocation8], %s221
        %s223 = smul.u32 2, %s21
        %s224 = smul.u32 2, %s21
        %v226 = vld [vmem:[%s189] sm:$0xff]
        %v227 = vld [vmem:[%s189 + $0x8] sm:$0xff]
        %v228 = vld [vmem:[#allocation5] sm:$0xff]
        %v229 = vld [vmem:[#allocation5 + $0x8] sm:$0xff]
        %v230 = vld [vmem:[#allocation5 + $0x10] sm:$0xff]
        %v231 = vld [vmem:[#allocation5 + $0x18] sm:$0xff]
        %v232 = vld [vmem:[#allocation5 + $0x20] sm:$0xff]
        %v233 = vld [vmem:[#allocation5 + $0x28] sm:$0xff]
        %v234 = vld [vmem:[#allocation5 + $0x30] sm:$0xff]
        %v235 = vld [vmem:[#allocation5 + $0x38] sm:$0xff]
        %v236 = vld [vmem:[#allocation5 + $0x40] sm:$0xff]
        %v237 = vld [vmem:[#allocation5 + $0x48] sm:$0xff]
        %v238 = vld [vmem:[#allocation5 + $0x50] sm:$0xff]
        %v239 = vld [vmem:[#allocation5 + $0x58] sm:$0xff]
        %v240 = vld [vmem:[#allocation5 + $0x60] sm:$0xff]
        %v241 = vld [vmem:[#allocation5 + $0x68] sm:$0xff]
        %v242 = vld [vmem:[#allocation5 + $0x70] sm:$0xff]
        %v243 = vld [vmem:[#allocation5 + $0x78] sm:$0xff]
        %v244 = vld [vmem:[#allocation5 + $0x80] sm:$0xff]
        %v245 = vld [vmem:[#allocation5 + $0x88] sm:$0xff]
        %v246 = vld [vmem:[#allocation5 + $0x90] sm:$0xff]
        %v247 = vld [vmem:[#allocation5 + $0x98] sm:$0xff]
        %v248 = vld [vmem:[#allocation5 + $0xa0] sm:$0xff]
        %v249 = vld [vmem:[#allocation5 + $0xa8] sm:$0xff]
        %v250 = vld [vmem:[#allocation5 + $0xb0] sm:$0xff]
        %v251 = vld [vmem:[#allocation5 + $0xb8] sm:$0xff]
        %v252 = vld [vmem:[#allocation7] sm:$0x3]
        %v254 = vperm.slane %v252, 0
        %v255 = vperm.slane %v252, 1
        %v260 = vunpack.c.l.b16 %v226
        %v261 = vunpack.c.h.b16 %v226
        %v262 = vunpack.c.l.b16 %v227
        %v263 = vunpack.c.h.b16 %v227
        %v264 = vpack.c.b16 %v262, %v260
        %v265 = vpack.c.b16 %v263, %v261
        %v291 = vunpack.c.l.b16 %v228
        %v292 = vunpack.c.h.b16 %v228
        %v293 = vunpack.c.l.b16 %v229
        %v294 = vunpack.c.h.b16 %v229
        %v295 = vunpack.c.l.b16 %v230
        %v296 = vunpack.c.h.b16 %v230
        %v297 = vunpack.c.l.b16 %v231
        %v298 = vunpack.c.h.b16 %v231
        %v299 = vunpack.c.l.b16 %v232
        %v300 = vunpack.c.h.b16 %v232
        %v301 = vunpack.c.l.b16 %v233
        %v302 = vunpack.c.h.b16 %v233
        %v303 = vunpack.c.l.b16 %v234
        %v304 = vunpack.c.h.b16 %v234
        %v305 = vunpack.c.l.b16 %v235
        %v306 = vunpack.c.h.b16 %v235
        %v307 = vunpack.c.l.b16 %v236
        %v308 = vunpack.c.h.b16 %v236
        %v309 = vunpack.c.l.b16 %v237
        %v310 = vunpack.c.h.b16 %v237
        %v311 = vunpack.c.l.b16 %v238
        %v312 = vunpack.c.h.b16 %v238
        %v313 = vunpack.c.l.b16 %v239
        %v314 = vunpack.c.h.b16 %v239
        %v315 = vunpack.c.l.b16 %v240
        %v316 = vunpack.c.h.b16 %v240
        %v317 = vunpack.c.l.b16 %v241
        %v318 = vunpack.c.h.b16 %v241
        %v319 = vunpack.c.l.b16 %v242
        %v320 = vunpack.c.h.b16 %v242
        %v321 = vunpack.c.l.b16 %v243
        %v322 = vunpack.c.h.b16 %v243
        %v323 = vunpack.c.l.b16 %v244
        %v324 = vunpack.c.h.b16 %v244
        %v325 = vunpack.c.l.b16 %v245
        %v326 = vunpack.c.h.b16 %v245
        %v327 = vunpack.c.l.b16 %v246
        %v328 = vunpack.c.h.b16 %v246
        %v329 = vunpack.c.l.b16 %v247
        %v330 = vunpack.c.h.b16 %v247
        %v331 = vunpack.c.l.b16 %v248
        %v332 = vunpack.c.h.b16 %v248
        %v333 = vunpack.c.l.b16 %v249
        %v334 = vunpack.c.h.b16 %v249
        %v335 = vunpack.c.l.b16 %v250
        %v336 = vunpack.c.h.b16 %v250
        %v337 = vunpack.c.l.b16 %v251
        %v338 = vunpack.c.h.b16 %v251
        %v339 = vpack.c.b16 %v293, %v291
        %v340 = vpack.c.b16 %v294, %v292
        %v341 = vpack.c.b16 %v297, %v295
        %v342 = vpack.c.b16 %v298, %v296
        %v343 = vpack.c.b16 %v301, %v299
        %v344 = vpack.c.b16 %v302, %v300
        %v345 = vpack.c.b16 %v305, %v303
        %v346 = vpack.c.b16 %v306, %v304
        %v347 = vpack.c.b16 %v309, %v307
        %v348 = vpack.c.b16 %v310, %v308
        %v349 = vpack.c.b16 %v313, %v311
        %v350 = vpack.c.b16 %v314, %v312
        %v351 = vpack.c.b16 %v317, %v315
        %v352 = vpack.c.b16 %v318, %v316
        %v353 = vpack.c.b16 %v321, %v319
        %v354 = vpack.c.b16 %v322, %v320
        %v355 = vpack.c.b16 %v325, %v323
        %v356 = vpack.c.b16 %v326, %v324
        %v357 = vpack.c.b16 %v329, %v327
        %v358 = vpack.c.b16 %v330, %v328
        %v359 = vpack.c.b16 %v333, %v331
        %v360 = vpack.c.b16 %v334, %v332
        %v361 = vpack.c.b16 %v337, %v335
        %v362 = vpack.c.b16 %v338, %v336
        %vm387 = vcmask 523264
        %v389 = vsel %vm387, %v265, 0
        %391 = vmatpush.bf16.msra.mxu0 %v353
        %392 = vmatpush.bf16.msra.mxu0 %v351
        %393 = vmatpush.bf16.msra.mxu0 %v349
        %394 = vmatpush.bf16.msra.mxu0 %v347
        %395 = vmatpush.bf16.msra.mxu0 %v345
        %396 = vmatpush.bf16.msra.mxu0 %v343
        %397 = vmatpush.bf16.msra.mxu0 %v341
        %398 = vmatpush.bf16.msra.mxu0 %v339
        %399 = vmatmul.bf16.gmra.mxu0 %v264
        %v400 = vpop.f32.mrf.mxu0
        %v401 = vadd.f32 %v254, %v400
        %v402 = vpop.f32.mrf.mxu0
        %v403 = vadd.f32 %v254, %v402
        %404 = vdwg.mxu0
        %405 = vmatpush.bf16.msra.mxu0 0
        %406 = vmatpush.bf16.msra.mxu0 0
        %407 = vmatpush.bf16.msra.mxu0 0
        %408 = vmatpush.bf16.msra.mxu0 0
        %409 = vmatpush.bf16.msra.mxu0 %v361
        %410 = vmatpush.bf16.msra.mxu0 %v359
        %411 = vmatpush.bf16.msra.mxu0 %v357
        %412 = vmatpush.bf16.msra.mxu0 %v355
        %413 = vmatmul.bf16.gmra.mxu0 %v389
        %v414 = vpop.f32.mrf.mxu0
        %v415 = vadd.f32 %v401, %v414
        %v416 = vpop.f32.mrf.mxu0
        %v417 = vadd.f32 %v403, %v416
        %418 = vdwg.mxu0
        %419 = vmatpush.bf16.msra.mxu0 %v354
        %420 = vmatpush.bf16.msra.mxu0 %v352
        %421 = vmatpush.bf16.msra.mxu0 %v350
        %422 = vmatpush.bf16.msra.mxu0 %v348
        %423 = vmatpush.bf16.msra.mxu0 %v346
        %424 = vmatpush.bf16.msra.mxu0 %v344
        %425 = vmatpush.bf16.msra.mxu0 %v342
        %426 = vmatpush.bf16.msra.mxu0 %v340
        %427 = vmatmul.bf16.gmra.mxu0 %v264
        %v428 = vpop.f32.mrf.mxu0
        %v429 = vadd.f32 %v255, %v428
        %v430 = vpop.f32.mrf.mxu0
        %v431 = vadd.f32 %v255, %v430
        %432 = vdwg.mxu0
        %433 = vmatpush.bf16.msra.mxu0 0
        %434 = vmatpush.bf16.msra.mxu0 0
        %435 = vmatpush.bf16.msra.mxu0 0
        %436 = vmatpush.bf16.msra.mxu0 0
        %437 = vmatpush.bf16.msra.mxu0 %v362
        %438 = vmatpush.bf16.msra.mxu0 %v360
        %439 = vmatpush.bf16.msra.mxu0 %v358
        %440 = vmatpush.bf16.msra.mxu0 %v356
        %441 = vmatmul.bf16.gmra.mxu0 %v389
        %v442 = vpop.f32.mrf.mxu0
        %v443 = vadd.f32 %v429, %v442
        %v444 = vpop.f32.mrf.mxu0
        %v445 = vadd.f32 %v431, %v444
        %446 = vdwg.mxu0
        %v447 = vmax.f32 %v415, 0.0
        %v448 = vmax.f32 %v443, 0.0
        %v449 = vmax.f32 %v417, 0.0
        %v450 = vmax.f32 %v445, 0.0
        %v451 = vmin.f32 %v447, 1.0
        %v452 = vmin.f32 %v448, 1.0
        %v453 = vmin.f32 %v449, 1.0
        %v454 = vmin.f32 %v450, 1.0
        %455 = vst [vmem:[%s222] sm:$0xff] %v451
        %456 = vst [vmem:[%s222 + $0x8] sm:$0xff] %v452
        %457 = vst [vmem:[%s222 + $0x10] sm:$0xff] %v453
        %458 = vst [vmem:[%s222 + $0x18] sm:$0xff] %v454
        %s459 = sand.u32 %s97, 1
        %s460 = scalar_lea.sflag [#allocation4], %s459
        %s461 = sand.u32 %s97, 1
        %s462 = smul.addr %s461, 32
        %s463 = scalar_lea.vmem [#allocation8], %s462
        // Predicated region
        $region45: #{tpu_custom_call.1} parent=31 // pred_check
          %p464 = pneg %p107
        $region46: #{tpu_custom_call.1} parent=31 // pred_check_branch
          %466 = sbr.rel (%p464) target = $region48
        $region47: #{tpu_custom_call.1} parent=31 // pred_region
          %s467 = smul.u32 2, %s21
          %469 = vsyncadd %s460, 0
          %s470 = smul.addr %s467, 2
          %s471 = smul.addr %s470, 8
          %s472 = scalar_lea.hbm %s3, %s471
          %s473 = sshll.u32 %s463, 4
          %s474 = int_to_ptr.vmem [resolvable:$true] %s473
          %s475 = sshll.u32 %s472, 4
          %s476 = int_to_ptr.hbm [resolvable:$true] %s475
          %481 = dma.vmem_to_hbm [thread:$0]  %s474, 512, %s476, %s460, 256, 256, 16
        $region48: #{tpu_custom_call.1} parent=31 // pred_fallthru
          _
      $region32: #{tpu_custom_call.1} parent=5 // pred_fallthru
        _
      %p482 = scmp.le.s32.totalorder 2, %s16
      // Predicated region
      $region49: #{tpu_custom_call.1} parent=5 // pred_check
        %p483 = pneg %p482
      $region50: #{tpu_custom_call.1} parent=5 // pred_check_branch
        %485 = sbr.rel (%p483) target = $region52
      $region51: #{tpu_custom_call.1} parent=5 // pred_region
        %s486 = ssub.s32 %s16, 2
        // Predicated region
        $region53: #{tpu_custom_call.1} parent=51 // pred_check
          %p487 = pneg %p113
        $region54: #{tpu_custom_call.1} parent=51 // pred_check_branch
          %489 = sbr.rel (%p487) target = $region56
        $region55: #{tpu_custom_call.1} parent=51 // pred_region
          %s490 = sand.u32 %s98, 1
          %s491 = scalar_lea.sflag [#allocation4], %s490
          %s492 = sand.u32 %s98, 1
          %s493 = smul.addr %s492, 32
          %s494 = scalar_lea.vmem [#allocation8], %s493
          %496 = dma.done %s491, 512
        $region56: #{tpu_custom_call.1} parent=51 // pred_fallthru
          _
      $region52: #{tpu_custom_call.1} parent=5 // pred_fallthru
        _
    $region6: #{tpu_custom_call.1} parent=1 // loop_footer
      %s20 = sadd.s32 1, %s16
    $region7: #{tpu_custom_call.1} parent=1 // loop_footer_branch
      %15 = sbr.rel target = $region3
    $region8: #{tpu_custom_call.1} parent=1 // loop_exit
      _
    %497 = vsyncpa [#allocation3], 1
    %s498 = scalar_lea.sflag [#allocation3], 1
    %499 = vsyncpa %s498, 1
    %500 = vsyncpa [#allocation6], 1
    %501 = vsyncpa [#allocation4], 1
    %s502 = scalar_lea.sflag [#allocation4], 1
    %503 = vsyncpa %s502, 1

</llo_original>
